<compile_context>
chip_gen: v5e
topology: v5e:2x2
jax: 0.10.0
libtpu: 0.0.40
codegen_flags: <defaults>
</compile_context>

<pallas_src>
import jax
import jax.numpy as jnp
from jax.experimental import pallas as pl
from jax.experimental.pallas import tpu as pltpu

# (fan_in, fan_out) per layer, matching the PyTorch module.
LAYER_DIMS = [(6, 8), (8, 10), (10, 8), (8, 6), (6, 4)]
NUM_LAYERS = len(LAYER_DIMS)
F_PAD = 16                      # param-slab padding (covers the largest dim, 10)
X_ROWS = 8                      # input features padded 6 -> one sublane tile
IN_DIM = LAYER_DIMS[0][0]
OUT_DIM = LAYER_DIMS[-1][1]

# Per-layer static slice sizes used inside the kernel.
#  OUT_ROWS[l] = layer l out-features rounded up to a sublane tile (8).
#  IN_COLS[l]  = number of rows of the incoming activation (prev OUT_ROWS).
# Padded rows evaluate to sigmoid(0)=0.5 but the next layer's zero-padded
# weight columns multiply them by zero, so the real outputs are exact.
OUT_ROWS = (8, 16, 8, 8, 8)
IN_COLS = (X_ROWS, 8, 16, 8, 8)


def _mlp_kernel(w_ref, b_ref, x_ref, o_ref):
    """Fused forward pass, batch on lanes.

    w_ref: (NUM_LAYERS, F_PAD, F_PAD)  zero-padded PyTorch-layout (out, in) weights
    b_ref: (NUM_LAYERS, F_PAD, 1)      zero-padded biases
    x_ref: (X_ROWS, tb)                activations, batch on the lane dim
    o_ref: (OUT_DIM, tb)
    """
    h = x_ref[...]                                       # (X_ROWS, tb) f32
    for l in range(NUM_LAYERS):                          # static unroll, 5 layers
        w = w_ref[l, :OUT_ROWS[l], :IN_COLS[l]]          # static sub-slab slice
        b = b_ref[l, :OUT_ROWS[l], :]                    # (rows, 1) -> lane broadcast
        y = jnp.dot(w, h, preferred_element_type=jnp.float32) + b
        # sigmoid(x) == 0.5 * (tanh(x/2) + 1): one EUP op/element vs exp+div.
        h = 0.5 * jnp.tanh(0.5 * y) + 0.5
    o_ref[...] = h[:OUT_DIM, :].astype(o_ref.dtype)


def _choose_tb(batch):
    """Batch-lane tile: big enough to amortize per-step overhead, >=2 grid
    steps for large batches (v7x megacore), capped at 4096 (VMEM stays tiny:
    32 B/sample per buffered input tile)."""
    target = -(-batch // 2)                    # ceil(batch / 2)
    tb = -(-max(target, 1) // 256) * 256       # round up to 256 lanes
    return max(256, min(tb, 4096))


@jax.jit
def mlp_forward(x, w_slab, b_slab):
    """x: (B, 6) float32 -> (B, 4) float32, identical semantics to the torch Model."""
    B, in_f = x.shape
    tb = _choose_tb(B)                         # static at trace time
    Bp = pl.cdiv(B, tb) * tb

    # Single wrapper-side transpose + pad: (B, 6) -> (X_ROWS, Bp), batch on lanes.
    # TODO(synk): could fold this transpose into the kernel (XLU) to skip the
    # intermediate HBM slab entirely; kept in the wrapper for lowering robustness.
    xt = jnp.zeros((X_ROWS, Bp), jnp.float32).at[:in_f, :B].set(
        x.astype(jnp.float32).T)

    flops = 2 * B * sum(i * o for i, o in LAYER_DIMS)
    transcendentals = B * sum(o for _, o in LAYER_DIMS)
    bytes_accessed = 4 * (xt.size + w_slab.size + b_slab.size + OUT_DIM * Bp)

    out_t = pl.pallas_call(
        _mlp_kernel,
        out_shape=jax.ShapeDtypeStruct((OUT_DIM, Bp), jnp.float32),
        grid=(Bp // tb,),
        in_specs=[
            # Parameter slabs: constant block across the batch grid -> DMA'd once.
            pl.BlockSpec((NUM_LAYERS, F_PAD, F_PAD), lambda i: (0, 0, 0)),
            pl.BlockSpec((NUM_LAYERS, F_PAD, 1), lambda i: (0, 0, 0)),
            # Activations: tile the lane (batch) dimension.
            pl.BlockSpec((X_ROWS, tb), lambda i: (0, i)),
        ],
        out_specs=pl.BlockSpec((OUT_DIM, tb), lambda i: (0, i)),
        compiler_params=pltpu.CompilerParams(
            dimension_semantics=("parallel",)),
        cost_estimate=pl.CostEstimate(
            flops=flops,
            transcendentals=transcendentals,
            bytes_accessed=bytes_accessed),
    )(w_slab, b_slab, xt)

    # Back to PyTorch layout (B, 4), dropping batch padding.
    return out_t[:, :B].T


def pack_params(params):
    """params: list of (W (out,in), b (out,)) in PyTorch layout.
    Returns the two zero-padded slabs consumed by the kernel."""
    w_slab = jnp.zeros((NUM_LAYERS, F_PAD, F_PAD), jnp.float32)
    b_slab = jnp.zeros((NUM_LAYERS, F_PAD, 1), jnp.float32)
    for l, (w, b) in enumerate(params):
        out_f, in_f = w.shape
        w_slab = w_slab.at[l, :out_f, :in_f].set(w.astype(jnp.float32))
        b_slab = b_slab.at[l, :out_f, 0].set(b.astype(jnp.float32))
    return w_slab, b_slab


def init_params(key):
    """PyTorch nn.Linear default init: U(-1/sqrt(fan_in), 1/sqrt(fan_in)).
    Weights kept in PyTorch (out, in) layout."""
    params = []
    for (fan_in, fan_out) in LAYER_DIMS:
        key, kw, kb = jax.random.split(key, 3)
        bound = 1.0 / float(fan_in) ** 0.5
        w = jax.random.uniform(kw, (fan_out, fan_in), jnp.float32, -bound, bound)
        b = jax.random.uniform(kb, (fan_out,), jnp.float32, -bound, bound)
        params.append((w, b))
    return params


def reference_forward(x, params):
    """Pure-JAX reference matching torch: y = sigmoid(x @ W.T + b) per layer."""
    h = x
    for (w, b) in params:
        h = jax.nn.sigmoid(h @ w.T + b)
    return h


if __name__ == "__main__":
    key = jax.random.PRNGKey(0)
    key, kx1, kx2, kx3 = jax.random.split(key, 4)

    params = init_params(key)
    w_slab, b_slab = pack_params(params)

    # Small batch (matches the module's tiny scale).
    batch = 8
    x = jax.random.normal(kx1, (batch, IN_DIM), jnp.float32)
    out = jax.block_until_ready(mlp_forward(x, w_slab, b_slab))
    ref = reference_forward(x, params)
    assert out.shape == (batch, OUT_DIM), out.shape
    assert jnp.allclose(out, ref, atol=1e-5, rtol=1e-5), (
        f"max abs err {jnp.max(jnp.abs(out - ref))}")

    # Exercise a multi-step batch grid (2 lane tiles, partial last tile).
    batch2 = 300
    x2 = jax.random.normal(kx2, (batch2, IN_DIM), jnp.float32)
    out2 = jax.block_until_ready(mlp_forward(x2, w_slab, b_slab))
    ref2 = reference_forward(x2, params)
    assert out2.shape == (batch2, OUT_DIM), out2.shape
    assert jnp.allclose(out2, ref2, atol=1e-5, rtol=1e-5), (
        f"max abs err {jnp.max(jnp.abs(out2 - ref2))}")

    # Exercise a larger tile choice (tb > 256) with batch padding.
    batch3 = 2049
    x3 = jax.random.normal(kx3, (batch3, IN_DIM), jnp.float32)
    out3 = jax.block_until_ready(mlp_forward(x3, w_slab, b_slab))
    ref3 = reference_forward(x3, params)
    assert out3.shape == (batch3, OUT_DIM), out3.shape
    assert jnp.allclose(out3, ref3, atol=1e-5, rtol=1e-5), (
        f"max abs err {jnp.max(jnp.abs(out3 - ref3))}")

    print("KERNEL_OK")
</pallas_src>

<mosaic_0001>
module attributes {stable_mosaic.version = 11 : i64} {
  func.func @_mlp_kernel(%arg0: i32, %arg1: memref<5x16x16xf32, #tpu.memory_space<vmem>>, %arg2: memref<5x16x1xf32, #tpu.memory_space<vmem>>, %arg3: memref<8x256xf32, #tpu.memory_space<vmem>>, %arg4: memref<4x256xf32, #tpu.memory_space<vmem>>) attributes {dimension_semantics = [#tpu.dimension_semantics<parallel>], iteration_bounds = array<i64: 1>, scalar_prefetch = 0 : i64, scratch_operands = 0 : i64, tpu.core_type = #tpu.core_type<tc>, window_params = [{pipeline_mode = #tpu.pipeline_mode<synchronous>, transform_indices = @transform_0, window_bounds = array<i64: 5, 16, 16>}, {pipeline_mode = #tpu.pipeline_mode<synchronous>, transform_indices = @transform_1, window_bounds = array<i64: 5, 16, 1>}, {transform_indices = @transform_2, window_bounds = array<i64: 8, 256>}, {transform_indices = @transform_3, window_bounds = array<i64: 4, 256>}]} {
    %c0 = arith.constant 0 : index
    %c0_0 = arith.constant 0 : index
    %0 = vector.load %arg3[%c0, %c0_0] : memref<8x256xf32, #tpu.memory_space<vmem>>, vector<8x256xf32>
    %c0_1 = arith.constant 0 : index
    %c0_2 = arith.constant 0 : index
    %c0_3 = arith.constant 0 : index
    %1 = vector.load %arg1[%c0_1, %c0_2, %c0_3] : memref<5x16x16xf32, #tpu.memory_space<vmem>>, vector<1x8x8xf32>
    %2 = vector.shape_cast %1 : vector<1x8x8xf32> to vector<8x8xf32>
    %c0_4 = arith.constant 0 : index
    %c0_5 = arith.constant 0 : index
    %c0_6 = arith.constant 0 : index
    %3 = vector.load %arg2[%c0_4, %c0_5, %c0_6] : memref<5x16x1xf32, #tpu.memory_space<vmem>>, vector<1x8x1xf32>
    %4 = vector.shape_cast %3 : vector<1x8x1xf32> to vector<8x1xf32>
    %cst = arith.constant dense<0.000000e+00> : vector<8x256xf32>
    %5 = tpu.matmul %2, %0, %cst {dimension_numbers = #tpu.dot_dimension_numbers<[1], [0], [0], [1], [0, 0, 1, 1], [], []>} : vector<8x8xf32>, vector<8x256xf32>, vector<8x256xf32> -> vector<8x256xf32>
    %6 = vector.broadcast %4 : vector<8x1xf32> to vector<8x256xf32>
    %7 = arith.addf %5, %6 : vector<8x256xf32>
    %cst_7 = arith.constant 5.000000e-01 : f32
    %8 = vector.broadcast %cst_7 : f32 to vector<8x256xf32>
    %9 = arith.mulf %8, %7 : vector<8x256xf32>
    %10 = math.tanh %9 : vector<8x256xf32>
    %cst_8 = arith.constant 5.000000e-01 : f32
    %11 = vector.broadcast %cst_8 : f32 to vector<8x256xf32>
    %12 = arith.mulf %11, %10 : vector<8x256xf32>
    %cst_9 = arith.constant 5.000000e-01 : f32
    %13 = vector.broadcast %cst_9 : f32 to vector<8x256xf32>
    %14 = arith.addf %12, %13 : vector<8x256xf32>
    %c1 = arith.constant 1 : index
    %c0_10 = arith.constant 0 : index
    %c0_11 = arith.constant 0 : index
    %15 = vector.load %arg1[%c1, %c0_10, %c0_11] : memref<5x16x16xf32, #tpu.memory_space<vmem>>, vector<1x16x8xf32>
    %16 = vector.shape_cast %15 : vector<1x16x8xf32> to vector<16x8xf32>
    %c1_12 = arith.constant 1 : index
    %c0_13 = arith.constant 0 : index
    %c0_14 = arith.constant 0 : index
    %17 = vector.load %arg2[%c1_12, %c0_13, %c0_14] : memref<5x16x1xf32, #tpu.memory_space<vmem>>, vector<1x16x1xf32>
    %18 = vector.shape_cast %17 : vector<1x16x1xf32> to vector<16x1xf32>
    %cst_15 = arith.constant dense<0.000000e+00> : vector<16x256xf32>
    %19 = tpu.matmul %16, %14, %cst_15 {dimension_numbers = #tpu.dot_dimension_numbers<[1], [0], [0], [1], [0, 0, 1, 1], [], []>} : vector<16x8xf32>, vector<8x256xf32>, vector<16x256xf32> -> vector<16x256xf32>
    %20 = vector.broadcast %18 : vector<16x1xf32> to vector<16x256xf32>
    %21 = arith.addf %19, %20 : vector<16x256xf32>
    %cst_16 = arith.constant 5.000000e-01 : f32
    %22 = vector.broadcast %cst_16 : f32 to vector<16x256xf32>
    %23 = arith.mulf %22, %21 : vector<16x256xf32>
    %24 = math.tanh %23 : vector<16x256xf32>
    %cst_17 = arith.constant 5.000000e-01 : f32
    %25 = vector.broadcast %cst_17 : f32 to vector<16x256xf32>
    %26 = arith.mulf %25, %24 : vector<16x256xf32>
    %cst_18 = arith.constant 5.000000e-01 : f32
    %27 = vector.broadcast %cst_18 : f32 to vector<16x256xf32>
    %28 = arith.addf %26, %27 : vector<16x256xf32>
    %c2 = arith.constant 2 : index
    %c0_19 = arith.constant 0 : index
    %c0_20 = arith.constant 0 : index
    %29 = vector.load %arg1[%c2, %c0_19, %c0_20] : memref<5x16x16xf32, #tpu.memory_space<vmem>>, vector<1x8x16xf32>
    %30 = vector.shape_cast %29 : vector<1x8x16xf32> to vector<8x16xf32>
    %c2_21 = arith.constant 2 : index
    %c0_22 = arith.constant 0 : index
    %c0_23 = arith.constant 0 : index
    %31 = vector.load %arg2[%c2_21, %c0_22, %c0_23] : memref<5x16x1xf32, #tpu.memory_space<vmem>>, vector<1x8x1xf32>
    %32 = vector.shape_cast %31 : vector<1x8x1xf32> to vector<8x1xf32>
    %cst_24 = arith.constant dense<0.000000e+00> : vector<8x256xf32>
    %33 = tpu.matmul %30, %28, %cst_24 {dimension_numbers = #tpu.dot_dimension_numbers<[1], [0], [0], [1], [0, 0, 1, 1], [], []>} : vector<8x16xf32>, vector<16x256xf32>, vector<8x256xf32> -> vector<8x256xf32>
    %34 = vector.broadcast %32 : vector<8x1xf32> to vector<8x256xf32>
    %35 = arith.addf %33, %34 : vector<8x256xf32>
    %cst_25 = arith.constant 5.000000e-01 : f32
    %36 = vector.broadcast %cst_25 : f32 to vector<8x256xf32>
    %37 = arith.mulf %36, %35 : vector<8x256xf32>
    %38 = math.tanh %37 : vector<8x256xf32>
    %cst_26 = arith.constant 5.000000e-01 : f32
    %39 = vector.broadcast %cst_26 : f32 to vector<8x256xf32>
    %40 = arith.mulf %39, %38 : vector<8x256xf32>
    %cst_27 = arith.constant 5.000000e-01 : f32
    %41 = vector.broadcast %cst_27 : f32 to vector<8x256xf32>
    %42 = arith.addf %40, %41 : vector<8x256xf32>
    %c3 = arith.constant 3 : index
    %c0_28 = arith.constant 0 : index
    %c0_29 = arith.constant 0 : index
    %43 = vector.load %arg1[%c3, %c0_28, %c0_29] : memref<5x16x16xf32, #tpu.memory_space<vmem>>, vector<1x8x8xf32>
    %44 = vector.shape_cast %43 : vector<1x8x8xf32> to vector<8x8xf32>
    %c3_30 = arith.constant 3 : index
    %c0_31 = arith.constant 0 : index
    %c0_32 = arith.constant 0 : index
    %45 = vector.load %arg2[%c3_30, %c0_31, %c0_32] : memref<5x16x1xf32, #tpu.memory_space<vmem>>, vector<1x8x1xf32>
    %46 = vector.shape_cast %45 : vector<1x8x1xf32> to vector<8x1xf32>
    %cst_33 = arith.constant dense<0.000000e+00> : vector<8x256xf32>
    %47 = tpu.matmul %44, %42, %cst_33 {dimension_numbers = #tpu.dot_dimension_numbers<[1], [0], [0], [1], [0, 0, 1, 1], [], []>} : vector<8x8xf32>, vector<8x256xf32>, vector<8x256xf32> -> vector<8x256xf32>
    %48 = vector.broadcast %46 : vector<8x1xf32> to vector<8x256xf32>
    %49 = arith.addf %47, %48 : vector<8x256xf32>
    %cst_34 = arith.constant 5.000000e-01 : f32
    %50 = vector.broadcast %cst_34 : f32 to vector<8x256xf32>
    %51 = arith.mulf %50, %49 : vector<8x256xf32>
    %52 = math.tanh %51 : vector<8x256xf32>
    %cst_35 = arith.constant 5.000000e-01 : f32
    %53 = vector.broadcast %cst_35 : f32 to vector<8x256xf32>
    %54 = arith.mulf %53, %52 : vector<8x256xf32>
    %cst_36 = arith.constant 5.000000e-01 : f32
    %55 = vector.broadcast %cst_36 : f32 to vector<8x256xf32>
    %56 = arith.addf %54, %55 : vector<8x256xf32>
    %c4 = arith.constant 4 : index
    %c0_37 = arith.constant 0 : index
    %c0_38 = arith.constant 0 : index
    %57 = vector.load %arg1[%c4, %c0_37, %c0_38] : memref<5x16x16xf32, #tpu.memory_space<vmem>>, vector<1x8x8xf32>
    %58 = vector.shape_cast %57 : vector<1x8x8xf32> to vector<8x8xf32>
    %c4_39 = arith.constant 4 : index
    %c0_40 = arith.constant 0 : index
    %c0_41 = arith.constant 0 : index
    %59 = vector.load %arg2[%c4_39, %c0_40, %c0_41] : memref<5x16x1xf32, #tpu.memory_space<vmem>>, vector<1x8x1xf32>
    %60 = vector.shape_cast %59 : vector<1x8x1xf32> to vector<8x1xf32>
    %cst_42 = arith.constant dense<0.000000e+00> : vector<8x256xf32>
    %61 = tpu.matmul %58, %56, %cst_42 {dimension_numbers = #tpu.dot_dimension_numbers<[1], [0], [0], [1], [0, 0, 1, 1], [], []>} : vector<8x8xf32>, vector<8x256xf32>, vector<8x256xf32> -> vector<8x256xf32>
    %62 = vector.broadcast %60 : vector<8x1xf32> to vector<8x256xf32>
    %63 = arith.addf %61, %62 : vector<8x256xf32>
    %cst_43 = arith.constant 5.000000e-01 : f32
    %64 = vector.broadcast %cst_43 : f32 to vector<8x256xf32>
    %65 = arith.mulf %64, %63 : vector<8x256xf32>
    %66 = math.tanh %65 : vector<8x256xf32>
    %cst_44 = arith.constant 5.000000e-01 : f32
    %67 = vector.broadcast %cst_44 : f32 to vector<8x256xf32>
    %68 = arith.mulf %67, %66 : vector<8x256xf32>
    %cst_45 = arith.constant 5.000000e-01 : f32
    %69 = vector.broadcast %cst_45 : f32 to vector<8x256xf32>
    %70 = arith.addf %68, %69 : vector<8x256xf32>
    %71 = vector.extract_strided_slice %70 {offsets = [0, 0], sizes = [4, 256], strides = [1, 1]} : vector<8x256xf32> to vector<4x256xf32>
    %c0_46 = arith.constant 0 : index
    %c0_47 = arith.constant 0 : index
    %72 = vector.load %arg4[%c0_46, %c0_47] : memref<4x256xf32, #tpu.memory_space<vmem>>, vector<4x256xf32>
    tpu.vector_store %arg4[%c0_46, %c0_47], %71 {strides = array<i32>} : memref<4x256xf32, #tpu.memory_space<vmem>>, vector<4x256xf32>,
    return
  }
  func.func @transform_0(%arg0: i32) -> (i32, i32, i32) {
    %c0_i32 = arith.constant 0 : i32
    %c0_i32_0 = arith.constant 0 : i32
    %c0_i32_1 = arith.constant 0 : i32
    %c0_i32_2 = arith.constant 0 : i32
    return %c0_i32, %c0_i32_0, %c0_i32_1 : i32, i32, i32
  }
  func.func @transform_1(%arg0: i32) -> (i32, i32, i32) {
    %c0_i32 = arith.constant 0 : i32
    %c0_i32_0 = arith.constant 0 : i32
    %c0_i32_1 = arith.constant 0 : i32
    %c0_i32_2 = arith.constant 0 : i32
    return %c0_i32, %c0_i32_0, %c0_i32_1 : i32, i32, i32
  }
  func.func @transform_2(%arg0: i32) -> (i32, i32) {
    %c0_i32 = arith.constant 0 : i32
    %c0_i32_0 = arith.constant 0 : i32
    return %c0_i32, %arg0 : i32, i32
  }
  func.func @transform_3(%arg0: i32) -> (i32, i32) {
    %c0_i32 = arith.constant 0 : i32
    %c0_i32_0 = arith.constant 0 : i32
    return %c0_i32, %arg0 : i32, i32
  }
}

</mosaic_0001>

<llo_original>
// kernel: mlp_forward.1
$region0: #{mlp_forward.1}
  #allocation0 [shape = 'u32[]', space=smem, size = 0x4, offset = 0x4, fixed_abs, tag = 'smem constant byte address 0x4 - core index']
  #allocation1 [shape = 'u32[72,128]{1,0:T(1,128)}', space=vmem, size = 0x9000, scoped, tag = 'internal scratch']
  %s0 = inlined_call_operand.vmem [shape: f32[5,16,16], index: 0, kind: input, shape index: {}]
  %s1 = inlined_call_operand.vmem [shape: f32[5,16,1], index: 1, kind: input, shape index: {}]
  %s2 = inlined_call_operand.vmem [shape: f32[8,256], index: 2, kind: input, shape index: {}]
  %s3 = inlined_call_operand.vmem [shape: f32[4,256], index: 3, kind: output, shape index: {}]
  %s4 = sld [smem:[#allocation0]]
  $region22: #{mlp_forward.1} parent=0
    _
  %s6 = ssub.s32 1, %s4
  %s7 = scalar_select 0, %s6, %s4
  // Predicated region
  $region2: #{mlp_forward.1} parent=0 // pred_check
    _
  $region3: #{mlp_forward.1} parent=0 // pred_check_branch
    %9 = sbr.rel (0) target = $region5
  $region4: #{mlp_forward.1} parent=0 // pred_region
    _
  $region5: #{mlp_forward.1} parent=0 // pred_fallthru
    _
  // Predicated region
  $region6: #{mlp_forward.1} parent=0 // pred_check
    _
  $region7: #{mlp_forward.1} parent=0 // pred_check_branch
    %11 = sbr.rel (0) target = $region9
  $region8: #{mlp_forward.1} parent=0 // pred_region
    _
  $region9: #{mlp_forward.1} parent=0 // pred_fallthru
    _
  // Predicated region
  $region10: #{mlp_forward.1} parent=0 // pred_check
    _
  $region11: #{mlp_forward.1} parent=0 // pred_check_branch
    %13 = sbr.rel (0) target = $region13
  $region12: #{mlp_forward.1} parent=0 // pred_region
    _
  $region13: #{mlp_forward.1} parent=0 // pred_fallthru
    _
  %v14 = vld [vmem:[%s2] sm:$0xff]
  %v15 = vld [vmem:[%s2 + $0x8] sm:$0xff]
  %v16 = vld [vmem:[%s0] sm:$0xff]
  %v17 = vld [vmem:[%s1] sm:$0xff]
  %19 = vset.pattern.permute.xlu0 0
  %20 = vperm.xlu0 %19, %v17
  %v21 = vpop.permute.xlu0 %20
  %vm23 = vcmask 64512
  %v25 = vsel %vm23, %v16, 0
  %27 = vmatpush.msra.mxu0 0.0
  %28 = vmatpush.msra.mxu0 0.0
  %29 = vmatpush.msra.mxu0 0.0
  %30 = vmatpush.msra.mxu0 0.0
  %31 = vmatpush.msra.mxu0 0.0
  %32 = vmatpush.msra.mxu0 0.0
  %33 = vmatpush.msra.mxu0 0.0
  %34 = vmatpush.msra.mxu0 0.0
  %35 = vmatpush.msra.mxu0 0.0
  %36 = vmatpush.msra.mxu0 0.0
  %37 = vmatpush.msra.mxu0 0.0
  %38 = vmatpush.msra.mxu0 0.0
  %39 = vmatpush.msra.mxu0 0.0
  %40 = vmatpush.msra.mxu0 0.0
  %41 = vmatpush.msra.mxu0 0.0
  %42 = vmatpush.msra.mxu0 %v14
  %43 = vmatmul.f32.gmra.mxu0 %v25
  %v44 = vpop.f32.mrf.mxu0
  %v45 = vadd.f32 %v21, %v44
  %46 = vdwg.mxu0
  %47 = vmatpush.msra.mxu0 0.0
  %48 = vmatpush.msra.mxu0 0.0
  %49 = vmatpush.msra.mxu0 0.0
  %50 = vmatpush.msra.mxu0 0.0
  %51 = vmatpush.msra.mxu0 0.0
  %52 = vmatpush.msra.mxu0 0.0
  %53 = vmatpush.msra.mxu0 0.0
  %54 = vmatpush.msra.mxu0 0.0
  %55 = vmatpush.msra.mxu0 0.0
  %56 = vmatpush.msra.mxu0 0.0
  %57 = vmatpush.msra.mxu0 0.0
  %58 = vmatpush.msra.mxu0 0.0
  %59 = vmatpush.msra.mxu0 0.0
  %60 = vmatpush.msra.mxu0 0.0
  %61 = vmatpush.msra.mxu0 0.0
  %62 = vmatpush.msra.mxu0 %v15
  %63 = vmatmul.f32.gmra.mxu0 %v25
  %v64 = vpop.f32.mrf.mxu0
  %v65 = vadd.f32 %v21, %v64
  %66 = vdwg.mxu0
  %v67 = vmul.f32 %v45, 0.5
  %v68 = vmul.f32 %v65, 0.5
  %v69 = vtanh.pop %v67
  %v70 = vtanh.pop %v68
  %v71 = vmul.f32 %v69, 0.5
  %v72 = vmul.f32 %v70, 0.5
  %v73 = vadd.f32 %v71, 0.5
  %v74 = vadd.f32 %v72, 0.5
  %s75 = scalar_lea.vmem %s0, 16
  %v76 = vld [vmem:[%s75] sm:$0xff]
  %v77 = vld [vmem:[%s75 + $0x8] sm:$0xff]
  %s78 = scalar_lea.vmem %s1, 16
  %v79 = vld [vmem:[%s78] sm:$0xff]
  %v80 = vld [vmem:[%s78 + $0x8] sm:$0xff]
  %82 = vset.pattern.permute.xlu0 0
  %83 = vperm.xlu0 %82, %v79
  %v84 = vpop.permute.xlu0 %83
  %87 = vset.pattern.permute.xlu0 0
  %88 = vperm.xlu0 %87, %v80
  %v89 = vpop.permute.xlu0 %88
  %v92 = vsel %vm23, %v76, 0
  %v95 = vsel %vm23, %v77, 0
  %97 = vmatpush.msra.mxu0 0.0
  %98 = vmatpush.msra.mxu0 0.0
  %99 = vmatpush.msra.mxu0 0.0
  %100 = vmatpush.msra.mxu0 0.0
  %101 = vmatpush.msra.mxu0 0.0
  %102 = vmatpush.msra.mxu0 0.0
  %103 = vmatpush.msra.mxu0 0.0
  %104 = vmatpush.msra.mxu0 0.0
  %105 = vmatpush.msra.mxu0 0.0
  %106 = vmatpush.msra.mxu0 0.0
  %107 = vmatpush.msra.mxu0 0.0
  %108 = vmatpush.msra.mxu0 0.0
  %109 = vmatpush.msra.mxu0 0.0
  %110 = vmatpush.msra.mxu0 0.0
  %111 = vmatpush.msra.mxu0 0.0
  %112 = vmatpush.msra.mxu0 %v73
  %113 = vmatmul.f32.gmra.mxu0 %v92
  %v114 = vpop.f32.mrf.mxu0
  %v115 = vadd.f32 %v84, %v114
  %116 = vmatmul.f32.gmra.mxu0 %v95
  %v117 = vpop.f32.mrf.mxu0
  %v118 = vadd.f32 %v89, %v117
  %119 = vdwg.mxu0
  %120 = vmatpush.msra.mxu0 0.0
  %121 = vmatpush.msra.mxu0 0.0
  %122 = vmatpush.msra.mxu0 0.0
  %123 = vmatpush.msra.mxu0 0.0
  %124 = vmatpush.msra.mxu0 0.0
  %125 = vmatpush.msra.mxu0 0.0
  %126 = vmatpush.msra.mxu0 0.0
  %127 = vmatpush.msra.mxu0 0.0
  %128 = vmatpush.msra.mxu0 0.0
  %129 = vmatpush.msra.mxu0 0.0
  %130 = vmatpush.msra.mxu0 0.0
  %131 = vmatpush.msra.mxu0 0.0
  %132 = vmatpush.msra.mxu0 0.0
  %133 = vmatpush.msra.mxu0 0.0
  %134 = vmatpush.msra.mxu0 0.0
  %135 = vmatpush.msra.mxu0 %v74
  %136 = vmatmul.f32.gmra.mxu0 %v92
  %v137 = vpop.f32.mrf.mxu0
  %v138 = vadd.f32 %v84, %v137
  %139 = vmatmul.f32.gmra.mxu0 %v95
  %v140 = vpop.f32.mrf.mxu0
  %v141 = vadd.f32 %v89, %v140
  %142 = vdwg.mxu0
  %v143 = vmul.f32 %v115, 0.5
  %v144 = vmul.f32 %v138, 0.5
  %v145 = vmul.f32 %v118, 0.5
  %v146 = vmul.f32 %v141, 0.5
  %v147 = vtanh.pop %v143
  %v148 = vtanh.pop %v144
  %v149 = vtanh.pop %v145
  %v150 = vtanh.pop %v146
  %v151 = vmul.f32 %v147, 0.5
  %v152 = vmul.f32 %v148, 0.5
  %v153 = vmul.f32 %v149, 0.5
  %v154 = vmul.f32 %v150, 0.5
  %v155 = vadd.f32 %v151, 0.5
  %v156 = vadd.f32 %v152, 0.5
  %v157 = vadd.f32 %v153, 0.5
  %v158 = vadd.f32 %v154, 0.5
  %s159 = scalar_lea.vmem %s0, 32
  %v160 = vld [vmem:[%s159] sm:$0xff]
  %s161 = scalar_lea.vmem %s1, 32
  %v162 = vld [vmem:[%s161] sm:$0xff]
  %164 = vset.pattern.permute.xlu0 0
  %165 = vperm.xlu0 %164, %v162
  %v166 = vpop.permute.xlu0 %165
  %vm168 = vcmask 130048
  %v170 = vsel %vm168, %v160, 0
  %172 = vmatpush.msra.mxu0 0.0
  %173 = vmatpush.msra.mxu0 0.0
  %174 = vmatpush.msra.mxu0 0.0
  %175 = vmatpush.msra.mxu0 0.0
  %176 = vmatpush.msra.mxu0 0.0
  %177 = vmatpush.msra.mxu0 0.0
  %178 = vmatpush.msra.mxu0 0.0
  %179 = vmatpush.msra.mxu0 0.0
  %180 = vmatpush.msra.mxu0 0.0
  %181 = vmatpush.msra.mxu0 0.0
  %182 = vmatpush.msra.mxu0 0.0
  %183 = vmatpush.msra.mxu0 0.0
  %184 = vmatpush.msra.mxu0 0.0
  %185 = vmatpush.msra.mxu0 0.0
  %186 = vmatpush.msra.mxu0 %v157
  %187 = vmatpush.msra.mxu0 %v155
  %188 = vmatmul.f32.gmra.mxu0 %v170
  %v189 = vpop.f32.mrf.mxu0
  %v190 = vadd.f32 %v166, %v189
  %191 = vdwg.mxu0
  %192 = vmatpush.msra.mxu0 0.0
  %193 = vmatpush.msra.mxu0 0.0
  %194 = vmatpush.msra.mxu0 0.0
  %195 = vmatpush.msra.mxu0 0.0
  %196 = vmatpush.msra.mxu0 0.0
  %197 = vmatpush.msra.mxu0 0.0
  %198 = vmatpush.msra.mxu0 0.0
  %199 = vmatpush.msra.mxu0 0.0
  %200 = vmatpush.msra.mxu0 0.0
  %201 = vmatpush.msra.mxu0 0.0
  %202 = vmatpush.msra.mxu0 0.0
  %203 = vmatpush.msra.mxu0 0.0
  %204 = vmatpush.msra.mxu0 0.0
  %205 = vmatpush.msra.mxu0 0.0
  %206 = vmatpush.msra.mxu0 %v158
  %207 = vmatpush.msra.mxu0 %v156
  %208 = vmatmul.f32.gmra.mxu0 %v170
  %v209 = vpop.f32.mrf.mxu0
  %v210 = vadd.f32 %v166, %v209
  %211 = vdwg.mxu0
  %v212 = vmul.f32 %v190, 0.5
  %v213 = vmul.f32 %v210, 0.5
  %v214 = vtanh.pop %v212
  %v215 = vtanh.pop %v213
  %v216 = vmul.f32 %v214, 0.5
  %v217 = vmul.f32 %v215, 0.5
  %v218 = vadd.f32 %v216, 0.5
  %v219 = vadd.f32 %v217, 0.5
  %s220 = scalar_lea.vmem %s0, 48
  %v221 = vld [vmem:[%s220] sm:$0xff]
  %s222 = scalar_lea.vmem %s1, 48
  %v223 = vld [vmem:[%s222] sm:$0xff]
  %225 = vset.pattern.permute.xlu0 0
  %226 = vperm.xlu0 %225, %v223
  %v227 = vpop.permute.xlu0 %226
  %v230 = vsel %vm23, %v221, 0
  %232 = vmatpush.msra.mxu0 0.0
  %233 = vmatpush.msra.mxu0 0.0
  %234 = vmatpush.msra.mxu0 0.0
  %235 = vmatpush.msra.mxu0 0.0
  %236 = vmatpush.msra.mxu0 0.0
  %237 = vmatpush.msra.mxu0 0.0
  %238 = vmatpush.msra.mxu0 0.0
  %239 = vmatpush.msra.mxu0 0.0
  %240 = vmatpush.msra.mxu0 0.0
  %241 = vmatpush.msra.mxu0 0.0
  %242 = vmatpush.msra.mxu0 0.0
  %243 = vmatpush.msra.mxu0 0.0
  %244 = vmatpush.msra.mxu0 0.0
  %245 = vmatpush.msra.mxu0 0.0
  %246 = vmatpush.msra.mxu0 0.0
  %247 = vmatpush.msra.mxu0 %v218
  %248 = vmatmul.f32.gmra.mxu0 %v230
  %v249 = vpop.f32.mrf.mxu0
  %v250 = vadd.f32 %v227, %v249
  %251 = vdwg.mxu0
  %252 = vmatpush.msra.mxu0 0.0
  %253 = vmatpush.msra.mxu0 0.0
  %254 = vmatpush.msra.mxu0 0.0
  %255 = vmatpush.msra.mxu0 0.0
  %256 = vmatpush.msra.mxu0 0.0
  %257 = vmatpush.msra.mxu0 0.0
  %258 = vmatpush.msra.mxu0 0.0
  %259 = vmatpush.msra.mxu0 0.0
  %260 = vmatpush.msra.mxu0 0.0
  %261 = vmatpush.msra.mxu0 0.0
  %262 = vmatpush.msra.mxu0 0.0
  %263 = vmatpush.msra.mxu0 0.0
  %264 = vmatpush.msra.mxu0 0.0
  %265 = vmatpush.msra.mxu0 0.0
  %266 = vmatpush.msra.mxu0 0.0
  %267 = vmatpush.msra.mxu0 %v219
  %268 = vmatmul.f32.gmra.mxu0 %v230
  %v269 = vpop.f32.mrf.mxu0
  %v270 = vadd.f32 %v227, %v269
  %271 = vdwg.mxu0
  %v272 = vmul.f32 %v250, 0.5
  %v273 = vmul.f32 %v270, 0.5
  %v274 = vtanh.pop %v272
  %v275 = vtanh.pop %v273
  %v276 = vmul.f32 %v274, 0.5
  %v277 = vmul.f32 %v275, 0.5
  %v278 = vadd.f32 %v276, 0.5
  %v279 = vadd.f32 %v277, 0.5
  %s280 = scalar_lea.vmem %s0, 64
  %v281 = vld [vmem:[%s280] sm:$0xff]
  %s282 = scalar_lea.vmem %s1, 64
  %v283 = vld [vmem:[%s282] sm:$0xff]
  %285 = vset.pattern.permute.xlu0 0
  %286 = vperm.xlu0 %285, %v283
  %v287 = vpop.permute.xlu0 %286
  %v290 = vsel %vm23, %v281, 0
  %292 = vmatpush.msra.mxu0 0.0
  %293 = vmatpush.msra.mxu0 0.0
  %294 = vmatpush.msra.mxu0 0.0
  %295 = vmatpush.msra.mxu0 0.0
  %296 = vmatpush.msra.mxu0 0.0
  %297 = vmatpush.msra.mxu0 0.0
  %298 = vmatpush.msra.mxu0 0.0
  %299 = vmatpush.msra.mxu0 0.0
  %300 = vmatpush.msra.mxu0 0.0
  %301 = vmatpush.msra.mxu0 0.0
  %302 = vmatpush.msra.mxu0 0.0
  %303 = vmatpush.msra.mxu0 0.0
  %304 = vmatpush.msra.mxu0 0.0
  %305 = vmatpush.msra.mxu0 0.0
  %306 = vmatpush.msra.mxu0 0.0
  %307 = vmatpush.msra.mxu0 %v278
  %308 = vmatmul.f32.gmra.mxu0 %v290
  %v309 = vpop.f32.mrf.mxu0
  %v310 = vadd.f32 %v287, %v309
  %311 = vdwg.mxu0
  %312 = vmatpush.msra.mxu0 0.0
  %313 = vmatpush.msra.mxu0 0.0
  %314 = vmatpush.msra.mxu0 0.0
  %315 = vmatpush.msra.mxu0 0.0
  %316 = vmatpush.msra.mxu0 0.0
  %317 = vmatpush.msra.mxu0 0.0
  %318 = vmatpush.msra.mxu0 0.0
  %319 = vmatpush.msra.mxu0 0.0
  %320 = vmatpush.msra.mxu0 0.0
  %321 = vmatpush.msra.mxu0 0.0
  %322 = vmatpush.msra.mxu0 0.0
  %323 = vmatpush.msra.mxu0 0.0
  %324 = vmatpush.msra.mxu0 0.0
  %325 = vmatpush.msra.mxu0 0.0
  %326 = vmatpush.msra.mxu0 0.0
  %327 = vmatpush.msra.mxu0 %v279
  %328 = vmatmul.f32.gmra.mxu0 %v290
  %v329 = vpop.f32.mrf.mxu0
  %v330 = vadd.f32 %v287, %v329
  %331 = vdwg.mxu0
  %v332 = vmul.f32 %v310, 0.5
  %v333 = vmul.f32 %v330, 0.5
  %v334 = vtanh.pop %v332
  %v335 = vtanh.pop %v333
  %v336 = vmul.f32 %v334, 0.5
  %v337 = vmul.f32 %v335, 0.5
  %v338 = vadd.f32 %v336, 0.5
  %v339 = vadd.f32 %v337, 0.5
  %v342 = vrot.slane %v339, 4
  %vm343 = vcmask 1043456
  %v344 = vsel %vm343, %v338, %v342
  %346 = vst [vmem:[%s3] sm:$0xff] %v344
  // Predicated region
  $region14: #{mlp_forward.1} parent=0 // pred_check
    _
  $region15: #{mlp_forward.1} parent=0 // pred_check_branch
    %348 = sbr.rel (0) target = $region17
  $region16: #{mlp_forward.1} parent=0 // pred_region
    _
  $region17: #{mlp_forward.1} parent=0 // pred_fallthru
    _
  // Predicated region
  $region18: #{mlp_forward.1} parent=0 // pred_check
    _
  $region19: #{mlp_forward.1} parent=0 // pred_check_branch
    %350 = sbr.rel (0) target = $region21
  $region20: #{mlp_forward.1} parent=0 // pred_region
    _
  $region21: #{mlp_forward.1} parent=0 // pred_fallthru
    _

</llo_original>
